<compile_context>
chip_gen: v5e
topology: v5e:2x2
jax: 0.10.0
libtpu: 0.0.40
codegen_flags: <defaults>
</compile_context>

<pallas_src>
import functools

import jax
import jax.numpy as jnp
from jax.experimental import pallas as pl
from jax.experimental.pallas import tpu as pltpu

_LANES = 128


def _budget():
    """(per-input tile bytes, vmem_limit_bytes), adapted to the chip's VMEM."""
    tile_bytes, vmem_limit = 4 * 1024 * 1024, 48 * 1024 * 1024   # safe on 64 MiB VMEM
    try:
        info = pltpu.get_tpu_info()
        cap = getattr(info, "vmem_capacity_bytes", None)
        if cap is not None and cap >= 96 * 1024 * 1024:          # v5e / v6e: 128 MiB
            tile_bytes, vmem_limit = 8 * 1024 * 1024, 96 * 1024 * 1024
    except Exception:
        pass
    return tile_bytes, vmem_limit


def _row_align(itemsize):
    # native sublane packing: 8 rows for 32-bit, 16 for bf16, 32 for 8-bit
    return 8 * max(1, 4 // itemsize)


def _kl_elem(p, q):
    p = p.astype(jnp.float32)
    q = q.astype(jnp.float32)
    return (p - q) * jnp.log(p / (q + 0.001) + 0.001)


# ---------------------------------------------------------------------------
# weights=None path: flat lane-dense sum, 2-way TensorCore split.
# ---------------------------------------------------------------------------
def _kl_flat_kernel(p_ref, q_ref, out_ref, *, total_rows, block_rows, nb_per,
                    need_mask):
    """p_ref/q_ref: (block_rows, 128) tiles; out_ref: (1, 1, 128) per-core acc."""
    c = pl.program_id(0)
    i = pl.program_id(1)

    @pl.when(i == 0)
    def _():
        out_ref[...] = jnp.zeros_like(out_ref)

    elem = _kl_elem(p_ref[...], q_ref[...])                 # (block_rows, 128) f32

    if need_mask:
        gi = c * nb_per + i                                  # nominal global block
        is_edge = (gi + 1) * block_rows > total_rows         # partial / overflow blk

        @pl.when(is_edge)
        def _():
            row = jax.lax.broadcasted_iota(jnp.int32, elem.shape, 0) + gi * block_rows
            # select (NOT multiply-by-mask): garbage rows may hold NaN/Inf.
            masked = jnp.where(row < total_rows, elem, 0.0)
            out_ref[...] += jnp.sum(masked, axis=0, keepdims=True)[None]

        @pl.when(jnp.logical_not(is_edge))
        def _():
            out_ref[...] += jnp.sum(elem, axis=0, keepdims=True)[None]
    else:
        out_ref[...] += jnp.sum(elem, axis=0, keepdims=True)[None]


def _kl_sum_no_weights(p, q, tile_bytes, vmem_limit):
    """sum over ALL elements of (p - q) * log(p / (q + 1e-3) + 1e-3)."""
    total = p.size
    pf = p.reshape(-1)
    qf = q.reshape(-1)
    rows = total // _LANES
    main = rows * _LANES
    tail = total - main

    # <128-element tail handled in the wrapper (no full-array pad copy).
    tail_sum = jnp.float32(0.0)
    if tail:
        tail_sum = jnp.sum(_kl_elem(pf[main:], qf[main:]))
    if rows == 0:
        return tail_sum

    itemsize = jnp.dtype(p.dtype).itemsize
    align = _row_align(itemsize)
    tr_max = max(align, (tile_bytes // (itemsize * _LANES)) // align * align)

    if rows <= tr_max:
        tr, nb_total = rows, 1
    else:
        tr = tr_max
        nb_total = pl.cdiv(rows, tr)

    # Split across the 2 TensorCores when there is enough work.
    if nb_total >= 4:
        split, nb_per = 2, (nb_total + 1) // 2
    else:
        split, nb_per = 1, nb_total
    need_mask = (split * nb_per * tr) != rows
    nb_last = nb_total - 1

    p2d = pf[:main].reshape(rows, _LANES)
    q2d = qf[:main].reshape(rows, _LANES)

    # Clamp so overflow grid steps re-read the last real block (their
    # contribution is fully masked away in the kernel).
    in_map = lambda c, i: (jnp.minimum(c * nb_per + i, nb_last), 0)

    lane_sums = pl.pallas_call(
        functools.partial(_kl_flat_kernel, total_rows=rows, block_rows=tr,
                          nb_per=nb_per, need_mask=need_mask),
        out_shape=jax.ShapeDtypeStruct((split, 1, _LANES), jnp.float32),
        grid=(split, nb_per),
        in_specs=[pl.BlockSpec((tr, _LANES), in_map),
                  pl.BlockSpec((tr, _LANES), in_map)],
        out_specs=pl.BlockSpec((1, 1, _LANES), lambda c, i: (c, 0, 0)),
        compiler_params=pltpu.CompilerParams(
            dimension_semantics=("parallel", "arbitrary"),
            vmem_limit_bytes=vmem_limit),
    )(p2d, q2d)
    return jnp.sum(lane_sums) + tail_sum


# ---------------------------------------------------------------------------
# weights path: per-batch partial sums (weights applied in the wrapper).
# ---------------------------------------------------------------------------
def _kl_rowsum_kernel(p_ref, q_ref, out_ref, *, total_rows, block_rows, need_mask):
    """p_ref/q_ref: (1, block_rows, L) tiles; out_ref: (1, 1, L) per-batch acc."""
    i = pl.program_id(1)

    @pl.when(i == 0)
    def _():
        out_ref[...] = jnp.zeros_like(out_ref)

    elem = _kl_elem(p_ref[0], q_ref[0])                      # (block_rows, L) f32

    if need_mask:
        last = pl.num_programs(1) - 1

        @pl.when(i == last)
        def _():
            row = jax.lax.broadcasted_iota(jnp.int32, elem.shape, 0) + i * block_rows
            masked = jnp.where(row < total_rows, elem, 0.0)
            out_ref[...] += jnp.sum(masked, axis=0, keepdims=True)[None]

        @pl.when(i != last)
        def _():
            out_ref[...] += jnp.sum(elem, axis=0, keepdims=True)[None]
    else:
        out_ref[...] += jnp.sum(elem, axis=0, keepdims=True)[None]


def _kl_sum_weighted_dense(p, q, w, tile_bytes, vmem_limit):
    """Lane-dense weighted path: requires 128 % C == 0 and (N*C) % 128 == 0."""
    B, N, C = p.shape
    rows_b = (N * C) // _LANES
    p3 = p.reshape(B, rows_b, _LANES)
    q3 = q.reshape(B, rows_b, _LANES)

    itemsize = jnp.dtype(p.dtype).itemsize
    align = _row_align(itemsize)
    tr_max = max(align, (tile_bytes // (itemsize * _LANES)) // align * align)
    if rows_b <= tr_max:
        tr, nb, need_mask = rows_b, 1, False
    else:
        tr = tr_max
        nb = pl.cdiv(rows_b, tr)
        need_mask = (rows_b % tr) != 0

    lane_sums = pl.pallas_call(
        functools.partial(_kl_rowsum_kernel, total_rows=rows_b, block_rows=tr,
                          need_mask=need_mask),
        out_shape=jax.ShapeDtypeStruct((B, 1, _LANES), jnp.float32),
        grid=(B, nb),
        in_specs=[pl.BlockSpec((1, tr, _LANES), lambda b, i: (b, i, 0)),
                  pl.BlockSpec((1, tr, _LANES), lambda b, i: (b, i, 0))],
        out_specs=pl.BlockSpec((1, 1, _LANES), lambda b, i: (b, 0, 0)),
        compiler_params=pltpu.CompilerParams(
            dimension_semantics=("parallel", "arbitrary"),
            vmem_limit_bytes=vmem_limit),
    )(p3, q3)
    # lane l holds column c = l % C  (since C divides 128): fold lanes -> (B, C)
    per_bc = lane_sums.reshape(B, _LANES // C, C).sum(axis=1)
    return jnp.sum(per_bc * w)


def _kl_sum_weighted_generic(p, q, w, tile_bytes, vmem_limit):
    """Fallback weighted path for C that does not divide 128."""
    B, N, C = p.shape
    itemsize = jnp.dtype(p.dtype).itemsize
    align = _row_align(itemsize)
    # VMEM stores the minor dim padded to a multiple of 128 lanes.
    lanes_per_row = _LANES * pl.cdiv(C, _LANES)
    tn_max = max(align, (tile_bytes // (itemsize * lanes_per_row)) // align * align)
    if N <= tn_max:
        tn, nt, need_mask = N, 1, False
    else:
        tn = tn_max
        nt = pl.cdiv(N, tn)
        need_mask = (N % tn) != 0

    sums = pl.pallas_call(
        functools.partial(_kl_rowsum_kernel, total_rows=N, block_rows=tn,
                          need_mask=need_mask),
        out_shape=jax.ShapeDtypeStruct((B, 1, C), jnp.float32),
        grid=(B, nt),
        in_specs=[pl.BlockSpec((1, tn, C), lambda b, n: (b, n, 0)),
                  pl.BlockSpec((1, tn, C), lambda b, n: (b, n, 0))],
        out_specs=pl.BlockSpec((1, 1, C), lambda b, n: (b, 0, 0)),
        compiler_params=pltpu.CompilerParams(
            dimension_semantics=("parallel", "arbitrary"),
            vmem_limit_bytes=vmem_limit),
    )(p, q)
    return jnp.sum(sums.reshape(B, C) * w)


# ---------------------------------------------------------------------------
# Public wrapper (forward of mmdet3d KLLoss).
# ---------------------------------------------------------------------------
def kl_loss(p, q, weights=None, avg_factor=None, loss_weight=1.0, *,
            _tile_bytes=None):
    """Pallas implementation of KLLoss.forward.

    NOTE: as in the reference torch module, loss_weight is accepted but NOT
    applied in forward().
    """
    assert p.shape == q.shape and p.ndim >= 2
    *lead, N, C = p.shape
    B = 1
    for d in lead:
        B *= d
    B = max(B, 1)
    p3 = p.reshape(B, N, C)
    q3 = q.reshape(B, N, C)

    tile_bytes, vmem_limit = _budget()
    if _tile_bytes is not None:
        tile_bytes = _tile_bytes

    if weights is None:
        total = _kl_sum_no_weights(p3, q3, tile_bytes, vmem_limit)
    else:
        w = jnp.broadcast_to(weights, tuple(lead) + (C,)).reshape(B, C)
        w = w.astype(jnp.float32)
        if (_LANES % C == 0) and ((N * C) % _LANES == 0):
            total = _kl_sum_weighted_dense(p3, q3, w, tile_bytes, vmem_limit)
        else:
            total = _kl_sum_weighted_generic(p3, q3, w, tile_bytes, vmem_limit)

    denom = avg_factor if avg_factor is not None else float(B * C)
    return total / denom


def _kl_loss_ref(p, q, weights=None, avg_factor=None):
    p = p.astype(jnp.float32)
    q = q.astype(jnp.float32)
    loss = ((p - q) * jnp.log(p / (q + 0.001) + 0.001)).sum(axis=-2)
    if weights is not None:
        loss = loss * weights
    if avg_factor is not None:
        return loss.sum() / avg_factor
    return loss.mean()


if __name__ == "__main__":
    key = jax.random.PRNGKey(0)
    kp, kq, kw, kp2, kq2, kw2, kp3, kq3, kw3, kp4, kq4, kw4 = jax.random.split(key, 12)

    # case 1/2: B=2, N=8, C=32, f32 (lane-dense weighted path)
    B, N, C = 2, 8, 32
    p = jax.random.uniform(kp, (B, N, C), jnp.float32, minval=0.01, maxval=1.0)
    q = jax.random.uniform(kq, (B, N, C), jnp.float32, minval=0.01, maxval=1.0)
    weights = jax.random.uniform(kw, (B, C), jnp.float32, minval=0.5, maxval=1.5)

    out1 = jax.block_until_ready(kl_loss(p, q))                                   # mean
    ref1 = _kl_loss_ref(p, q)
    assert jnp.allclose(out1, ref1, rtol=1e-5, atol=1e-5), (out1, ref1)

    out2 = jax.block_until_ready(kl_loss(p, q, weights=weights, avg_factor=7.0))
    ref2 = _kl_loss_ref(p, q, weights=weights, avg_factor=7.0)
    assert jnp.allclose(out2, ref2, rtol=1e-5, atol=1e-5), (out2, ref2)

    # case 3/4: odd shapes (128-lane tail + generic weighted path)
    B2, N2, C2 = 2, 12, 40
    p3 = jax.random.uniform(kp2, (B2, N2, C2), jnp.float32, minval=0.01, maxval=1.0)
    q3 = jax.random.uniform(kq2, (B2, N2, C2), jnp.float32, minval=0.01, maxval=1.0)
    w3 = jax.random.uniform(kw2, (B2, C2), jnp.float32, minval=0.5, maxval=1.5)

    out3 = jax.block_until_ready(kl_loss(p3, q3))
    ref3 = _kl_loss_ref(p3, q3)
    assert jnp.allclose(out3, ref3, rtol=1e-5, atol=1e-5), (out3, ref3)

    out4 = jax.block_until_ready(kl_loss(p3, q3, weights=w3, avg_factor=3.5))
    ref4 = _kl_loss_ref(p3, q3, weights=w3, avg_factor=3.5)
    assert jnp.allclose(out4, ref4, rtol=1e-5, atol=1e-5), (out4, ref4)

    # case 5: bf16 inputs pass through natively (cast to f32 happens in-kernel)
    p_bf = p.astype(jnp.bfloat16)
    q_bf = q.astype(jnp.bfloat16)
    out5 = jax.block_until_ready(kl_loss(p_bf, q_bf))
    ref5 = _kl_loss_ref(p_bf, q_bf)
    assert jnp.allclose(out5, ref5, rtol=1e-4, atol=1e-4), (out5, ref5)

    # case 6/7: multi-block + 2-core split + masking (tiny tile override)
    B3, N3, C3 = 3, 257, 48
    p6 = jax.random.uniform(kp3, (B3, N3, C3), jnp.float32, minval=0.01, maxval=1.0)
    q6 = jax.random.uniform(kq3, (B3, N3, C3), jnp.float32, minval=0.01, maxval=1.0)
    w6 = jax.random.uniform(kw3, (B3, C3), jnp.float32, minval=0.5, maxval=1.5)

    out6 = jax.block_until_ready(kl_loss(p6, q6, _tile_bytes=32 * 1024))
    ref6 = _kl_loss_ref(p6, q6)
    assert jnp.allclose(out6, ref6, rtol=1e-4, atol=1e-4), (out6, ref6)

    out7 = jax.block_until_ready(
        kl_loss(p6, q6, weights=w6, avg_factor=11.0, _tile_bytes=32 * 1024))
    ref7 = _kl_loss_ref(p6, q6, weights=w6, avg_factor=11.0)
    assert jnp.allclose(out7, ref7, rtol=1e-4, atol=1e-4), (out7, ref7)

    # case 8: multi-block lane-dense weighted path with masked last block
    B4, N4, C4 = 2, 520, 32
    p8 = jax.random.uniform(kp4, (B4, N4, C4), jnp.float32, minval=0.01, maxval=1.0)
    q8 = jax.random.uniform(kq4, (B4, N4, C4), jnp.float32, minval=0.01, maxval=1.0)
    w8 = jax.random.uniform(kw4, (B4, C4), jnp.float32, minval=0.5, maxval=1.5)

    out8 = jax.block_until_ready(
        kl_loss(p8, q8, weights=w8, avg_factor=5.0, _tile_bytes=32 * 1024))
    ref8 = _kl_loss_ref(p8, q8, weights=w8, avg_factor=5.0)
    assert jnp.allclose(out8, ref8, rtol=1e-4, atol=1e-4), (out8, ref8)

    print("KERNEL_OK")
</pallas_src>

<mosaic_0001>
module attributes {stable_mosaic.version = 11 : i64} {
  func.func @_kl_flat_kernel(%arg0: i32, %arg1: i32, %arg2: memref<4x128xf32, #tpu.memory_space<vmem>>, %arg3: memref<4x128xf32, #tpu.memory_space<vmem>>, %arg4: memref<1x1x128xf32, #tpu.memory_space<vmem>>) attributes {dimension_semantics = [#tpu.dimension_semantics<parallel>, #tpu.dimension_semantics<arbitrary>], iteration_bounds = array<i64: 1, 1>, scalar_prefetch = 0 : i64, scratch_operands = 0 : i64, tpu.core_type = #tpu.core_type<tc>, window_params = [{transform_indices = @transform_0, window_bounds = array<i64: 4, 128>}, {transform_indices = @transform_1, window_bounds = array<i64: 4, 128>}, {transform_indices = @transform_2, window_bounds = array<i64: 1, 1, 128>}]} {
    %c0_i32 = arith.constant 0 : i32
    %0 = arith.cmpi eq, %arg1, %c0_i32 : i32
    %1 = arith.extui %0 : i1 to i32
    %c0_i32_0 = arith.constant 0 : i32
    %2 = arith.cmpi ne, %1, %c0_i32_0 : i32
    scf.if %2 {
      %cst_12 = arith.constant 0.000000e+00 : f32
      %19 = vector.broadcast %cst_12 : f32 to vector<1x1x128xf32>
      %c0_13 = arith.constant 0 : index
      %c0_14 = arith.constant 0 : index
      %c0_15 = arith.constant 0 : index
      %20 = vector.load %arg4[%c0_13, %c0_14, %c0_15] : memref<1x1x128xf32, #tpu.memory_space<vmem>>, vector<1x1x128xf32>
      tpu.vector_store %arg4[%c0_13, %c0_14, %c0_15], %19 {strides = array<i32>} : memref<1x1x128xf32, #tpu.memory_space<vmem>>, vector<1x1x128xf32>,
    } else {
    }
    %c0 = arith.constant 0 : index
    %c0_1 = arith.constant 0 : index
    %3 = vector.load %arg2[%c0, %c0_1] : memref<4x128xf32, #tpu.memory_space<vmem>>, vector<4x128xf32>
    %c0_2 = arith.constant 0 : index
    %c0_3 = arith.constant 0 : index
    %4 = vector.load %arg3[%c0_2, %c0_3] : memref<4x128xf32, #tpu.memory_space<vmem>>, vector<4x128xf32>
    %5 = arith.subf %3, %4 : vector<4x128xf32>
    %cst = arith.constant 1.000000e-03 : f32
    %6 = vector.broadcast %cst : f32 to vector<4x128xf32>
    %7 = arith.addf %4, %6 : vector<4x128xf32>
    %8 = arith.divf %3, %7 : vector<4x128xf32>
    %cst_4 = arith.constant 1.000000e-03 : f32
    %9 = vector.broadcast %cst_4 : f32 to vector<4x128xf32>
    %10 = arith.addf %8, %9 : vector<4x128xf32>
    %11 = math.log %10 : vector<4x128xf32>
    %12 = arith.mulf %5, %11 : vector<4x128xf32>
    %c0_5 = arith.constant 0 : index
    %c0_6 = arith.constant 0 : index
    %c0_7 = arith.constant 0 : index
    %13 = vector.load %arg4[%c0_5, %c0_6, %c0_7] : memref<1x1x128xf32, #tpu.memory_space<vmem>>, vector<1x1x128xf32>
    %cst_8 = arith.constant dense<0.000000e+00> : vector<128xf32>
    %14 = vector.multi_reduction <add>, %12, %cst_8 [0] : vector<4x128xf32> to vector<128xf32>
    %15 = vector.shape_cast %14 : vector<128xf32> to vector<1x128xf32>
    %16 = vector.shape_cast %15 : vector<1x128xf32> to vector<1x1x128xf32>
    %17 = arith.addf %13, %16 : vector<1x1x128xf32>
    %c0_9 = arith.constant 0 : index
    %c0_10 = arith.constant 0 : index
    %c0_11 = arith.constant 0 : index
    %18 = vector.load %arg4[%c0_9, %c0_10, %c0_11] : memref<1x1x128xf32, #tpu.memory_space<vmem>>, vector<1x1x128xf32>
    tpu.vector_store %arg4[%c0_9, %c0_10, %c0_11], %17 {strides = array<i32>} : memref<1x1x128xf32, #tpu.memory_space<vmem>>, vector<1x1x128xf32>,
    return
  }
  func.func @transform_0(%arg0: i32, %arg1: i32) -> (i32, i32) {
    %c1_i32 = arith.constant 1 : i32
    %0 = arith.muli %arg0, %c1_i32 : i32
    %1 = arith.addi %0, %arg1 : i32
    %c0_i32 = arith.constant 0 : i32
    %2 = arith.minsi %1, %c0_i32 : i32
    %c0_i32_0 = arith.constant 0 : i32
    %c0_i32_1 = arith.constant 0 : i32
    return %2, %c0_i32_0 : i32, i32
  }
  func.func @transform_1(%arg0: i32, %arg1: i32) -> (i32, i32) {
    %c1_i32 = arith.constant 1 : i32
    %0 = arith.muli %arg0, %c1_i32 : i32
    %1 = arith.addi %0, %arg1 : i32
    %c0_i32 = arith.constant 0 : i32
    %2 = arith.minsi %1, %c0_i32 : i32
    %c0_i32_0 = arith.constant 0 : i32
    %c0_i32_1 = arith.constant 0 : i32
    return %2, %c0_i32_0 : i32, i32
  }
  func.func @transform_2(%arg0: i32, %arg1: i32) -> (i32, i32, i32) {
    %c0_i32 = arith.constant 0 : i32
    %c0_i32_0 = arith.constant 0 : i32
    %c0_i32_1 = arith.constant 0 : i32
    return %arg0, %c0_i32, %c0_i32_0 : i32, i32, i32
  }
}

</mosaic_0001>

<llo_original>
// kernel: tpu_custom_call.1
$region0: #{tpu_custom_call.1}
  #allocation0 [shape = 'u32[]', space=smem, size = 0x4, offset = 0x4, fixed_abs, tag = 'smem constant byte address 0x4 - core index']
  #allocation1 [shape = 'u32[72,128]{1,0:T(1,128)}', space=vmem, size = 0x9000, scoped, tag = 'internal scratch']
  %s0 = inlined_call_operand.hbm [shape: f32[4,128], index: 0, kind: input, shape index: {}]
  %s1 = inlined_call_operand.hbm [shape: f32[4,128], index: 1, kind: input, shape index: {}]
  %s2 = inlined_call_operand.hbm [shape: f32[1,1,128], index: 2, kind: output, shape index: {}]
  %s3 = sld [smem:[#allocation0]]
  $region30: #{tpu_custom_call.1} parent=0
    _
  %s5 = ssub.s32 1, %s3
  %s6 = scalar_select 0, %s5, %s3
  $region1: #{tpu_custom_call.1} parent=0
    #allocation2 [shape = 'u8[2048]{0}', space=vmem, size = 0x800, scoped, tag = 'input window, operand 0, single buffered']
    #allocation3 [shape = 's32[1]{0}', space=sflag, size = 0x4, scoped, tag = 'scoped memory for tpu_custom_call.1']
    #allocation4 [shape = 's32[1]{0}', space=sflag, size = 0x4, scoped, tag = 'scoped memory for tpu_custom_call.1']
    #allocation5 [shape = 'u8[2048]{0}', space=vmem, size = 0x800, scoped, tag = 'input window, operand 1, single buffered']
    #allocation6 [shape = 's32[1]{0}', space=sflag, size = 0x4, scoped, tag = 'scoped memory for tpu_custom_call.1']
    #allocation7 [shape = 'u8[512]{0}', space=vmem, size = 0x400, scoped, tag = 'output window, operand 0, single buffered']
    %7 = vsyncpa [#allocation3], 0
    %8 = vsyncpa [#allocation6], 0
    %9 = vsyncpa [#allocation4], 0
    // Predicated region
    $region2: #{tpu_custom_call.1} parent=1 // pred_check
      _
    $region3: #{tpu_custom_call.1} parent=1 // pred_check_branch
      %11 = sbr.rel (0) target = $region5
    $region4: #{tpu_custom_call.1} parent=1 // pred_region
      %s12 = sadd.s32 0, 0
      %p13 = scmp.lt.s32.totalorder %s12, 0
      %s14 = scalar_select %p13, %s12, 0
      %16 = vsyncadd [#allocation3], 0
      %s17 = smul.addr %s14, 4
      %s18 = scalar_lea.hbm %s0, %s17
      %s20 = sshll.u32 %s18, 4
      %s21 = int_to_ptr.hbm [resolvable:$true] %s20
      %s22 = sshll.u32 [#allocation2], 4
      %s23 = int_to_ptr.vmem [resolvable:$true] %s22
      %25 = dma.hbm_to_vmem [thread:$0]  %s21, 64, %s23, [#allocation3]
    $region5: #{tpu_custom_call.1} parent=1 // pred_fallthru
      _
    // Predicated region
    $region6: #{tpu_custom_call.1} parent=1 // pred_check
      _
    $region7: #{tpu_custom_call.1} parent=1 // pred_check_branch
      %27 = sbr.rel (0) target = $region9
    $region8: #{tpu_custom_call.1} parent=1 // pred_region
      %s28 = sadd.s32 0, 0
      %p29 = scmp.lt.s32.totalorder %s28, 0
      %s30 = scalar_select %p29, %s28, 0
      %32 = vsyncadd [#allocation6], 0
      %s33 = smul.addr %s30, 4
      %s34 = scalar_lea.hbm %s1, %s33
      %s36 = sshll.u32 %s34, 4
      %s37 = int_to_ptr.hbm [resolvable:$true] %s36
      %s38 = sshll.u32 [#allocation5], 4
      %s39 = int_to_ptr.vmem [resolvable:$true] %s38
      %41 = dma.hbm_to_vmem [thread:$0]  %s37, 64, %s39, [#allocation6]
    $region9: #{tpu_custom_call.1} parent=1 // pred_fallthru
      _
    // Predicated region
    $region10: #{tpu_custom_call.1} parent=1 // pred_check
      _
    $region11: #{tpu_custom_call.1} parent=1 // pred_check_branch
      %43 = sbr.rel (0) target = $region13
    $region12: #{tpu_custom_call.1} parent=1 // pred_region
      %45 = dma.done [#allocation3], 64
    $region13: #{tpu_custom_call.1} parent=1 // pred_fallthru
      _
    // Predicated region
    $region14: #{tpu_custom_call.1} parent=1 // pred_check
      _
    $region15: #{tpu_custom_call.1} parent=1 // pred_check_branch
      %47 = sbr.rel (0) target = $region17
    $region16: #{tpu_custom_call.1} parent=1 // pred_region
      %49 = dma.done [#allocation6], 64
    $region17: #{tpu_custom_call.1} parent=1 // pred_fallthru
      _
    %s50 = sadd.s32 0, 0
    %p51 = scmp.lt.s32.totalorder %s50, 0
    %s52 = scalar_select %p51, %s50, 0
    %s53 = sadd.s32 0, 0
    %p54 = scmp.lt.s32.totalorder %s53, 0
    %s55 = scalar_select %p54, %s53, 0
    %p56 = scmp.eq.s32.totalorder 0, 0
    // Predicated region
    $region18: #{tpu_custom_call.1} parent=1 // pred_check
      %p57 = pneg %p56
    $region19: #{tpu_custom_call.1} parent=1 // pred_check_branch
      %59 = sbr.rel (%p57) target = $region21
    $region20: #{tpu_custom_call.1} parent=1 // pred_region
      %60 = vst [vmem:[#allocation7] sm:$0x1] 0.0
    $region21: #{tpu_custom_call.1} parent=1 // pred_fallthru
      _
    %v61 = vld [vmem:[#allocation2] sm:$0xf]
    %v62 = vld [vmem:[#allocation5] sm:$0xf]
    %v63 = vsub.f32 %v61, %v62
    %v64 = vadd.f32 %v62, 0.001
    %v65 = vrcp.pop %v64
    %v66 = vmul.f32 %v64, %v65
    %v67 = vsub.f32 1.0, %v66
    %v68 = vmul.f32 %v65, %v67
    %v69 = vadd.f32 %v65, %v68
    %vm70 = vweird.f32 %v64
    %vm71 = vweird.f32 %v65
    %vm72 = vmor %vm70, %vm71
    %v73 = vsel %vm72, %v65, %v69
    %v74 = vand.u32 2147483647, %v64
    %vm75 = vcmp.eq.f32.partialorder %v74, 8.507059e+37
    %v76 = vand.u32 %v64, 2147483648
    %v77 = vor.u32 1.1754944e-38, %v76
    %v78 = vsel %vm75, %v77, %v73
    %v79 = vmul.f32 %v61, %v78
    %v80 = vadd.f32 %v79, 0.001
    %v81 = vlog2.pop %v80
    %v82 = vmul.f32 %v81, 0.6931472
    %v83 = vmul.f32 %v63, %v82
    %v84 = vld [vmem:[#allocation7] sm:$0x1]
    %vm85 = vcmask 1043456
    %v86 = vsel %vm85, %v83, 0.0
    %v87 = vrot.slane %v86, 4
    %v88 = vadd.f32 %v86, %v87
    %v89 = vrot.slane %v88, 2
    %v90 = vadd.f32 %v88, %v89
    %v91 = vrot.slane %v90, 1
    %v92 = vadd.f32 %v90, %v91
    %v93 = vadd.f32 %v84, %v92
    %94 = vst [vmem:[#allocation7] sm:$0x1] %v93
    // Predicated region
    $region22: #{tpu_custom_call.1} parent=1 // pred_check
      _
    $region23: #{tpu_custom_call.1} parent=1 // pred_check_branch
      %96 = sbr.rel (0) target = $region25
    $region24: #{tpu_custom_call.1} parent=1 // pred_region
      %98 = vsyncadd [#allocation4], 0
      %s100 = sshll.u32 [#allocation7], 4
      %s101 = int_to_ptr.vmem [resolvable:$true] %s100
      %s102 = sshll.u32 %s2, 4
      %s103 = int_to_ptr.hbm [resolvable:$true] %s102
      %105 = dma.vmem_to_hbm [thread:$0]  %s101, 16, %s103, [#allocation4]
    $region25: #{tpu_custom_call.1} parent=1 // pred_fallthru
      _
    // Predicated region
    $region26: #{tpu_custom_call.1} parent=1 // pred_check
      _
    $region27: #{tpu_custom_call.1} parent=1 // pred_check_branch
      %107 = sbr.rel (0) target = $region29
    $region28: #{tpu_custom_call.1} parent=1 // pred_region
      %109 = dma.done [#allocation4], 16
    $region29: #{tpu_custom_call.1} parent=1 // pred_fallthru
      _
    %110 = vsyncpa [#allocation3], 1
    %111 = vsyncpa [#allocation6], 1
    %112 = vsyncpa [#allocation4], 1

</llo_original>
